<compile_context>
chip_gen: v7x
topology: tpu7x:2x2x1
jax: 0.10.0
libtpu: 0.0.40
codegen_flags: <defaults>
</compile_context>

<pallas_src>
import functools

import jax
import jax.numpy as jnp
from jax.experimental import pallas as pl
from jax.experimental.pallas import tpu as pltpu


def _round_up(x: int, m: int) -> int:
    return ((x + m - 1) // m) * m


def _vmem_capacity_bytes() -> int:
    """Physical VMEM per TensorCore for the current chip (fallback: 64 MiB = v7x)."""
    try:
        info = pltpu.get_tpu_info()
        cap = int(getattr(info, "vmem_capacity_bytes", 0) or 0)
        if cap > 0:
            return cap
    except Exception:
        pass
    return 64 * 1024 * 1024


def swiglu_kernel(x_ref, w13_ref, w2_ref, o_ref, acc_ref, *, tf):
    """One (row-tile, d_ff-tile) step of out = (silu(x@W1^T) * (x@W3^T)) @ W2^T."""
    j = pl.program_id(1)

    @pl.when(j == 0)
    def _():
        acc_ref[...] = jnp.zeros_like(acc_ref)

    x = x_ref[...]                                                  # (tm, d_model)
    # Fused W1/W3 projection: one MXU matmul produces (tm, 2*tf). The stacked
    # weight was pre-transposed to (d_model, 2*tf) in the wrapper so the
    # contraction is over the standard K dim.
    x13 = jnp.dot(x, w13_ref[...], preferred_element_type=jnp.float32)
    x1 = x13[:, :tf]                     # 128-aligned lane slices -> free
    x3 = x13[:, tf:]
    # Fused SwiGLU gate (sigmoid runs on the EUP); cast to the w2 dtype for MXU.
    h = (x1 * jax.nn.sigmoid(x1) * x3).astype(w2_ref.dtype)        # (tm, tf)
    # Partial contribution of this d_ff tile; f32 accumulator resident in VMEM.
    acc_ref[...] += jnp.dot(h, w2_ref[...], preferred_element_type=jnp.float32)

    @pl.when(j == pl.num_programs(1) - 1)
    def _():
        o_ref[...] = acc_ref[...].astype(o_ref.dtype)


def swiglu_forward(x, w1, w2, w3, *, tm=None, tf=None):
    """SwiGLU FFN forward.

    x : (..., d_model)
    w1: (d_ff, d_model)   w3: (d_ff, d_model)   w2: (d_model, d_ff)
    (PyTorch Linear (out, in) layout; re-laid-out once in the wrapper.)
    """
    orig_shape = x.shape
    d_model = orig_shape[-1]
    d_ff = w1.shape[0]
    assert w1.shape == (d_ff, d_model)
    assert w3.shape == (d_ff, d_model)
    assert w2.shape == (d_model, d_ff)

    x2d = x.reshape(-1, d_model)
    M = x2d.shape[0]
    itemsize = jnp.dtype(x.dtype).itemsize
    w_itemsize = jnp.dtype(w1.dtype).itemsize
    sub = 8 if itemsize >= 4 else (16 if itemsize == 2 else 32)

    # ---- generation-dependent VMEM budget & default tiles -------------------
    cap = _vmem_capacity_bytes()
    if cap >= 128 * 1024 * 1024:                 # v5e / v6e: use most of 128 MiB
        vmem_limit = 100 * 1024 * 1024
        tm_req = 512 if tm is None else int(tm)
        tf_req = 512 if tf is None else int(tf)
    else:                                        # v7x: 64 MiB per TC
        vmem_limit = max(32 * 1024 * 1024, cap - 16 * 1024 * 1024)
        tm_req = 512 if tm is None else int(tm)
        tf_req = 256 if tf is None else int(tf)

    # ---- tile selection ------------------------------------------------------
    # tf: lane-aligned (multiple of 128; defaults are multiples of 256 for exact
    # MXU tiling). d_ff is zero-padded up to a multiple of tf -> no tf=d_ff
    # fallback that could blow VMEM for large d_ff.
    tf_sel = min(tf_req, _round_up(d_ff, 128))
    tf_sel = max(128, (tf_sel // 128) * 128)

    # tm: multiple of the sublane granularity; rows padded to a multiple of tm.
    tm_sel = min(tm_req, _round_up(M, sub))
    tm_sel = max(sub, (tm_sel // sub) * sub)

    # Shrink tiles until the double-buffered working set fits the VMEM budget.
    def _vmem_est(tm_, tf_):
        return (2 * tm_ * d_model * itemsize          # x (double-buffered)
                + 2 * d_model * 2 * tf_ * w_itemsize  # stacked W1/W3 slab
                + 2 * tf_ * d_model * w_itemsize      # W2^T slab
                + 2 * tm_ * d_model * itemsize        # out
                + tm_ * d_model * 4)                  # f32 accumulator scratch

    while _vmem_est(tm_sel, tf_sel) > vmem_limit and (tm_sel > sub or tf_sel > 128):
        if tm_sel > sub and (tm_sel >= tf_sel or tf_sel <= 128):
            tm_sel = max(sub, ((tm_sel // 2) // sub) * sub)
        else:
            tf_sel = max(128, ((tf_sel // 2) // 128) * 128)

    tm, tf = tm_sel, tf_sel
    M_pad = _round_up(M, tm)
    d_ff_pad = _round_up(d_ff, tf)
    n_tf = d_ff_pad // tf
    n_row = M_pad // tm

    if M_pad != M:
        x2d = jnp.pad(x2d, ((0, M_pad - M), (0, 0)))
    if d_ff_pad != d_ff:
        pad_ff = d_ff_pad - d_ff
        w1 = jnp.pad(w1, ((0, pad_ff), (0, 0)))
        w3 = jnp.pad(w3, ((0, pad_ff), (0, 0)))
        w2 = jnp.pad(w2, ((0, 0), (0, pad_ff)))

    # One-time (amortized under jit) weight re-layout:
    #   * transpose to (in, out) so both matmuls contract the standard K dim,
    #   * interleave W1/W3 per d_ff tile so each grid step needs a single
    #     weight DMA + a single MXU matmul for both gate projections.
    w1_t = jnp.transpose(w1).reshape(d_model, n_tf, tf)
    w3_t = jnp.transpose(w3).reshape(d_model, n_tf, tf)
    w13 = jnp.concatenate([w1_t, w3_t], axis=2).reshape(d_model, 2 * d_ff_pad)
    w2_t = jnp.transpose(w2)                                     # (d_ff_pad, d_model)

    grid = (n_row, n_tf)
    flops = 6 * M_pad * d_model * d_ff_pad
    bytes_accessed = (
        M_pad * d_model * itemsize                               # x (once per row tile)
        + M_pad * d_model * itemsize                             # out
        + n_row * (w13.size + w2_t.size) * w_itemsize            # weights re-streamed per row tile
    )

    out2d = pl.pallas_call(
        functools.partial(swiglu_kernel, tf=tf),
        out_shape=jax.ShapeDtypeStruct((M_pad, d_model), x.dtype),
        grid_spec=pltpu.PrefetchScalarGridSpec(
            num_scalar_prefetch=0,
            grid=grid,
            in_specs=[
                pl.BlockSpec((tm, d_model), lambda i, j: (i, 0)),      # x rows (resident over j)
                pl.BlockSpec((d_model, 2 * tf), lambda i, j: (0, j)),  # stacked W1|W3 slab
                pl.BlockSpec((tf, d_model), lambda i, j: (j, 0)),      # W2^T slab
            ],
            out_specs=pl.BlockSpec((tm, d_model), lambda i, j: (i, 0)),
            scratch_shapes=[pltpu.VMEM((tm, d_model), jnp.float32)],
        ),
        compiler_params=pltpu.CompilerParams(
            dimension_semantics=("parallel", "arbitrary"),
            vmem_limit_bytes=vmem_limit,
        ),
        cost_estimate=pl.CostEstimate(
            flops=flops,
            transcendentals=M_pad * d_ff_pad,
            bytes_accessed=bytes_accessed,
        ),
    )(x2d, w13, w2_t)

    if M_pad != M:
        out2d = out2d[:M]
    return out2d.reshape(orig_shape)


if __name__ == "__main__":
    # Small config consistent with the module (explicit d_ff so the reduction
    # axis has more than one tile).
    d_model = 32
    d_ff = 256
    batch, seq = 2, 8

    key = jax.random.PRNGKey(0)
    kx, k1, k2, k3 = jax.random.split(key, 4)

    x = jax.random.normal(kx, (batch, seq, d_model), dtype=jnp.float32)
    std = (2.0 / (d_model + d_ff)) ** 0.5
    w1 = jax.random.normal(k1, (d_ff, d_model), dtype=jnp.float32) * std
    w3 = jax.random.normal(k3, (d_ff, d_model), dtype=jnp.float32) * std
    w2 = jax.random.normal(k2, (d_model, d_ff), dtype=jnp.float32) * std

    def ref_swiglu(x, w1, w2, w3):
        x1 = x @ w1.T
        return (jax.nn.sigmoid(x1) * x1 * (x @ w3.T)) @ w2.T

    ref = ref_swiglu(x, w1, w2, w3)

    # fp32 path with small explicit tiles so both grid axes iterate (grid=(2,2)).
    out = swiglu_forward(x, w1, w2, w3, tm=8, tf=128)
    jax.block_until_ready(out)
    assert out.shape == x.shape
    assert jnp.allclose(out, ref, atol=1e-3, rtol=1e-3), "fp32 mismatch vs reference"

    # Generation-derived default tiles, bf16 fast path: MXU-native inputs,
    # f32 accumulation inside the kernel.
    out_bf16 = swiglu_forward(
        x.astype(jnp.bfloat16),
        w1.astype(jnp.bfloat16),
        w2.astype(jnp.bfloat16),
        w3.astype(jnp.bfloat16),
    )
    jax.block_until_ready(out_bf16)
    assert out_bf16.dtype == jnp.bfloat16
    assert jnp.allclose(out_bf16.astype(jnp.float32), ref, atol=5e-2, rtol=5e-2), \
        "bf16 mismatch vs reference"

    # d_ff not a multiple of the tile width -> exercises zero-padding of d_ff
    # (the fixed tf-fallback path).
    d_ff2 = 192
    w1b = jax.random.normal(k1, (d_ff2, d_model), dtype=jnp.float32) * std
    w3b = jax.random.normal(k3, (d_ff2, d_model), dtype=jnp.float32) * std
    w2b = jax.random.normal(k2, (d_model, d_ff2), dtype=jnp.float32) * std
    out_pad = swiglu_forward(x, w1b, w2b, w3b, tm=16, tf=128)
    jax.block_until_ready(out_pad)
    ref_pad = ref_swiglu(x, w1b, w2b, w3b)
    assert jnp.allclose(out_pad, ref_pad, atol=1e-3, rtol=1e-3), "padded d_ff mismatch"

    print("KERNEL_OK")
</pallas_src>

<mosaic_0001>
module attributes {stable_mosaic.version = 11 : i64} {
  func.func @swiglu_kernel(%arg0: i32, %arg1: i32, %arg2: memref<8x32xf32, #tpu.memory_space<vmem>>, %arg3: memref<32x256xf32, #tpu.memory_space<vmem>>, %arg4: memref<128x32xf32, #tpu.memory_space<vmem>>, %arg5: memref<8x32xf32, #tpu.memory_space<vmem>>, %arg6: memref<8x32xf32, #tpu.memory_space<vmem>>) attributes {dimension_semantics = [#tpu.dimension_semantics<parallel>, #tpu.dimension_semantics<arbitrary>], iteration_bounds = array<i64: 2, 2>, scalar_prefetch = 0 : i64, scratch_operands = 1 : i64, tpu.core_type = #tpu.core_type<tc>, window_params = [{transform_indices = @transform_0, window_bounds = array<i64: 8, 32>}, {transform_indices = @transform_1, window_bounds = array<i64: 32, 256>}, {transform_indices = @transform_2, window_bounds = array<i64: 128, 32>}, {transform_indices = @transform_3, window_bounds = array<i64: 8, 32>}]} {
    %c0_i32 = arith.constant 0 : i32
    %0 = arith.cmpi eq, %arg1, %c0_i32 : i32
    %1 = arith.extui %0 : i1 to i32
    %c0_i32_0 = arith.constant 0 : i32
    %2 = arith.cmpi ne, %1, %c0_i32_0 : i32
    scf.if %2 {
      %cst_13 = arith.constant 0.000000e+00 : f32
      %23 = vector.broadcast %cst_13 : f32 to vector<8x32xf32>
      %c0_14 = arith.constant 0 : index
      %c0_15 = arith.constant 0 : index
      %24 = vector.load %arg6[%c0_14, %c0_15] : memref<8x32xf32, #tpu.memory_space<vmem>>, vector<8x32xf32>
      tpu.vector_store %arg6[%c0_14, %c0_15], %23 {strides = array<i32>} : memref<8x32xf32, #tpu.memory_space<vmem>>, vector<8x32xf32>,
    } else {
    }
    %c0 = arith.constant 0 : index
    %c0_1 = arith.constant 0 : index
    %3 = vector.load %arg2[%c0, %c0_1] : memref<8x32xf32, #tpu.memory_space<vmem>>, vector<8x32xf32>
    %c0_2 = arith.constant 0 : index
    %c0_3 = arith.constant 0 : index
    %4 = vector.load %arg3[%c0_2, %c0_3] : memref<32x256xf32, #tpu.memory_space<vmem>>, vector<32x256xf32>
    %cst = arith.constant dense<0.000000e+00> : vector<8x256xf32>
    %5 = tpu.matmul %3, %4, %cst {dimension_numbers = #tpu.dot_dimension_numbers<[1], [0], [0], [1], [0, 0, 1, 1], [], []>} : vector<8x32xf32>, vector<32x256xf32>, vector<8x256xf32> -> vector<8x256xf32>
    %6 = vector.extract_strided_slice %5 {offsets = [0, 0], sizes = [8, 128], strides = [1, 1]} : vector<8x256xf32> to vector<8x128xf32>
    %7 = vector.extract_strided_slice %5 {offsets = [0, 128], sizes = [8, 128], strides = [1, 1]} : vector<8x256xf32> to vector<8x128xf32>
    %8 = arith.negf %6 : vector<8x128xf32>
    %9 = math.exp %8 : vector<8x128xf32>
    %cst_4 = arith.constant 1.000000e+00 : f32
    %10 = vector.broadcast %cst_4 : f32 to vector<8x128xf32>
    %11 = arith.addf %10, %9 : vector<8x128xf32>
    %12 = arith.divf %10, %11 : vector<8x128xf32>
    %13 = arith.mulf %6, %12 : vector<8x128xf32>
    %14 = arith.mulf %13, %7 : vector<8x128xf32>
    %c0_5 = arith.constant 0 : index
    %c0_6 = arith.constant 0 : index
    %15 = vector.load %arg6[%c0_5, %c0_6] : memref<8x32xf32, #tpu.memory_space<vmem>>, vector<8x32xf32>
    %c0_7 = arith.constant 0 : index
    %c0_8 = arith.constant 0 : index
    %16 = vector.load %arg4[%c0_7, %c0_8] : memref<128x32xf32, #tpu.memory_space<vmem>>, vector<128x32xf32>
    %cst_9 = arith.constant dense<0.000000e+00> : vector<8x32xf32>
    %17 = tpu.matmul %14, %16, %cst_9 {dimension_numbers = #tpu.dot_dimension_numbers<[1], [0], [0], [1], [0, 0, 1, 1], [], []>} : vector<8x128xf32>, vector<128x32xf32>, vector<8x32xf32> -> vector<8x32xf32>
    %18 = arith.addf %15, %17 : vector<8x32xf32>
    %c0_10 = arith.constant 0 : index
    %c0_11 = arith.constant 0 : index
    %19 = vector.load %arg6[%c0_10, %c0_11] : memref<8x32xf32, #tpu.memory_space<vmem>>, vector<8x32xf32>
    tpu.vector_store %arg6[%c0_10, %c0_11], %18 {strides = array<i32>} : memref<8x32xf32, #tpu.memory_space<vmem>>, vector<8x32xf32>,
    %c1_i32 = arith.constant 1 : i32
    %20 = arith.cmpi eq, %arg1, %c1_i32 : i32
    %21 = arith.extui %20 : i1 to i32
    %c0_i32_12 = arith.constant 0 : i32
    %22 = arith.cmpi ne, %21, %c0_i32_12 : i32
    scf.if %22 {
      %c0_13 = arith.constant 0 : index
      %c0_14 = arith.constant 0 : index
      %23 = vector.load %arg6[%c0_13, %c0_14] : memref<8x32xf32, #tpu.memory_space<vmem>>, vector<8x32xf32>
      %c0_15 = arith.constant 0 : index
      %c0_16 = arith.constant 0 : index
      %24 = vector.load %arg5[%c0_15, %c0_16] : memref<8x32xf32, #tpu.memory_space<vmem>>, vector<8x32xf32>
      tpu.vector_store %arg5[%c0_15, %c0_16], %23 {strides = array<i32>} : memref<8x32xf32, #tpu.memory_space<vmem>>, vector<8x32xf32>,
    } else {
    }
    return
  }
  func.func @transform_0(%arg0: i32, %arg1: i32) -> (i32, i32) {
    %c0_i32 = arith.constant 0 : i32
    %c0_i32_0 = arith.constant 0 : i32
    return %arg0, %c0_i32 : i32, i32
  }
  func.func @transform_1(%arg0: i32, %arg1: i32) -> (i32, i32) {
    %c0_i32 = arith.constant 0 : i32
    %c0_i32_0 = arith.constant 0 : i32
    return %c0_i32, %arg1 : i32, i32
  }
  func.func @transform_2(%arg0: i32, %arg1: i32) -> (i32, i32) {
    %c0_i32 = arith.constant 0 : i32
    %c0_i32_0 = arith.constant 0 : i32
    return %arg1, %c0_i32 : i32, i32
  }
  func.func @transform_3(%arg0: i32, %arg1: i32) -> (i32, i32) {
    %c0_i32 = arith.constant 0 : i32
    %c0_i32_0 = arith.constant 0 : i32
    return %arg0, %c0_i32 : i32, i32
  }
}

</mosaic_0001>

<llo_original>
// kernel: tpu_custom_call.1
$region0: #{tpu_custom_call.1}
  #allocation0 [shape = 'u32[]', space=smem, size = 0x4, offset = 0x4, fixed_abs, tag = 'smem constant byte address 0x4 - core index']
  #allocation1 [shape = 'u32[144,128]{1,0:T(1,128)}', space=vmem, size = 0x12000, scoped, tag = 'internal scratch']
  #allocation2 [shape = 'f32[8,32]{1,0:T(8,128)}', space=vmem, size = 0x1000, scoped, tag = 'scratch operand']
  %s0 = inlined_call_operand.vmem [shape: f32[16,32], index: 0, kind: input, shape index: {}]
  %s1 = inlined_call_operand.vmem [shape: f32[32,512], index: 1, kind: input, shape index: {}]
  %s2 = inlined_call_operand.vmem [shape: f32[256,32], index: 2, kind: input, shape index: {}]
  %s3 = inlined_call_operand.hbm [shape: f32[16,32], index: 3, kind: output, shape index: {}]
  %s4 = sld [smem:[#allocation0]]
  $region76: #{tpu_custom_call.1} parent=0
    _
  %s6 = ssub.s32 1, %s4
  %s7 = scalar_select 0, %s6, %s4
  $region1: #{tpu_custom_call.1} parent=0
    #allocation3 [shape = 'u8[65536]{0}', space=vmem, size = 0x10000, scoped, tag = 'input window, operand 1']
    #allocation4 [shape = 'u8[8192]{0}', space=vmem, size = 0x2000, scoped, tag = 'output window, operand 0']
    #allocation5 [shape = 's32[2]{0}', space=sflag, size = 0x8, scoped, tag = 'scoped memory for tpu_custom_call.1']
    %8 = vsyncpa [#allocation5], 0
    %s9 = scalar_lea.sflag [#allocation5], 1
    %10 = vsyncpa %s9, 0
    loop: start=0, step=1, limit=6
    $region2: #{tpu_custom_call.1} parent=1 // loop_pre_header
      _
    $region3: #{tpu_custom_call.1} parent=1 // loop_header
      %s12 = sphi 0, %s16
      %p13 = scmp.ge.s32.totalorder %s12, 6
      %s19 = sphi 0, %s31
      %s20 = sphi 0, %s27
      %s21 = sphi 0, %s19
      %s22 = sphi 0, %s20
      %s23 = sphi 0, %s21
      %s24 = sphi 0, %s22
      %s34 = sphi 0, %s36
      %s37 = sphi 0, %s34
      %s38 = sphi 0, %s37
      %s54 = sphi 0, %s38
      %s60 = sphi 0, %s62
      %s63 = sphi 0, %s60
      %s64 = sphi 0, %s63
      %s80 = sphi 0, %s64
      %s86 = sphi 0, %s88
      %s89 = sphi 0, %s86
      %s90 = sphi 0, %s89
      %s106 = sphi 0, %s90
      %s112 = sphi 0, %s114
      %s115 = sphi 0, %s112
      %s116 = sphi 0, %s115
      %s132 = sphi 0, %s116
    $region4: #{tpu_custom_call.1} parent=1 // loop_header_branch
      %15 = sbr.rel (%p13) target = $region8
    $region5: #{tpu_custom_call.1} parent=1 // loop_body
      %s17 = ssub.s32 %s12, 1
      %s18 = ssub.s32 %s12, 2
      %s25 = sadd.s32 1, %s20
      %p26 = scmp.ge.s32.totalorder %s25, 2
      %s27 = scalar_select %p26, 0, %s25
      %s28 = sadd.s32 1, %s19
      %s29 = scalar_select %p26, %s28, %s19
      %p30 = scmp.ge.s32.totalorder %s29, 2
      %s31 = scalar_select %p30, 0, %s29
      %s32 = ssub.s32 %s19, %s31
      %p33 = scmp.eq.s32.totalorder %s32, 0
      %s35 = sadd.s32 %s34, 1
      %s36 = scalar_select %p33, %s34, %s35
      %p39 = pneg %p33
      %p40 = scmp.eq.s32.totalorder %s12, 3
      %p41 = por %p39, %p40
      %p42 = scmp.ne.s32.totalorder %s34, %s37
      %p43 = scmp.eq.s32.totalorder %s12, 0
      %p44 = por %p42, %p43
      %p45 = scmp.ne.s32.totalorder %s34, %s37
      %p46 = scmp.eq.s32.totalorder %s17, 3
      %p47 = por %p45, %p46
      %p48 = scmp.ne.s32.totalorder %s37, %s38
      %p49 = scmp.eq.s32.totalorder %s17, 0
      %p50 = por %p48, %p49
      %p51 = scmp.ne.s32.totalorder %s37, %s38
      %p52 = scmp.eq.s32.totalorder %s18, 3
      %p53 = por %p51, %p52
      %p55 = scmp.ne.s32.totalorder %s38, %s54
      %p56 = scmp.eq.s32.totalorder %s18, 0
      %p57 = por %p55, %p56
      %s58 = ssub.s32 %s20, %s27
      %p59 = scmp.eq.s32.totalorder %s58, 0
      %s61 = sadd.s32 %s60, 1
      %s62 = scalar_select %p59, %s60, %s61
      %p65 = pneg %p59
      %p66 = scmp.eq.s32.totalorder %s12, 3
      %p67 = por %p65, %p66
      %p68 = scmp.ne.s32.totalorder %s60, %s63
      %p69 = scmp.eq.s32.totalorder %s12, 0
      %p70 = por %p68, %p69
      %p71 = scmp.ne.s32.totalorder %s60, %s63
      %p72 = scmp.eq.s32.totalorder %s17, 3
      %p73 = por %p71, %p72
      %p74 = scmp.ne.s32.totalorder %s63, %s64
      %p75 = scmp.eq.s32.totalorder %s17, 0
      %p76 = por %p74, %p75
      %p77 = scmp.ne.s32.totalorder %s63, %s64
      %p78 = scmp.eq.s32.totalorder %s18, 3
      %p79 = por %p77, %p78
      %p81 = scmp.ne.s32.totalorder %s64, %s80
      %p82 = scmp.eq.s32.totalorder %s18, 0
      %p83 = por %p81, %p82
      %s84 = ssub.s32 %s20, %s27
      %p85 = scmp.eq.s32.totalorder %s84, 0
      %s87 = sadd.s32 %s86, 1
      %s88 = scalar_select %p85, %s86, %s87
      %p91 = pneg %p85
      %p92 = scmp.eq.s32.totalorder %s12, 3
      %p93 = por %p91, %p92
      %p94 = scmp.ne.s32.totalorder %s86, %s89
      %p95 = scmp.eq.s32.totalorder %s12, 0
      %p96 = por %p94, %p95
      %p97 = scmp.ne.s32.totalorder %s86, %s89
      %p98 = scmp.eq.s32.totalorder %s17, 3
      %p99 = por %p97, %p98
      %p100 = scmp.ne.s32.totalorder %s89, %s90
      %p101 = scmp.eq.s32.totalorder %s17, 0
      %p102 = por %p100, %p101
      %p103 = scmp.ne.s32.totalorder %s89, %s90
      %p104 = scmp.eq.s32.totalorder %s18, 3
      %p105 = por %p103, %p104
      %p107 = scmp.ne.s32.totalorder %s90, %s106
      %p108 = scmp.eq.s32.totalorder %s18, 0
      %p109 = por %p107, %p108
      %s110 = ssub.s32 %s19, %s31
      %p111 = scmp.eq.s32.totalorder %s110, 0
      %s113 = sadd.s32 %s112, 1
      %s114 = scalar_select %p111, %s112, %s113
      %p117 = pneg %p111
      %p118 = scmp.eq.s32.totalorder %s12, 3
      %p119 = por %p117, %p118
      %p120 = scmp.ne.s32.totalorder %s112, %s115
      %p121 = scmp.eq.s32.totalorder %s12, 0
      %p122 = por %p120, %p121
      %p123 = scmp.ne.s32.totalorder %s112, %s115
      %p124 = scmp.eq.s32.totalorder %s17, 3
      %p125 = por %p123, %p124
      %p126 = scmp.ne.s32.totalorder %s115, %s116
      %p127 = scmp.eq.s32.totalorder %s17, 0
      %p128 = por %p126, %p127
      %p129 = scmp.ne.s32.totalorder %s115, %s116
      %p130 = scmp.eq.s32.totalorder %s18, 3
      %p131 = por %p129, %p130
      %p133 = scmp.ne.s32.totalorder %s116, %s132
      %p134 = scmp.eq.s32.totalorder %s18, 0
      %p135 = por %p133, %p134
      %p136 = scmp.le.s32.totalorder 1, %s12
      %p137 = scmp.lt.s32.totalorder %s12, 5
      %p138 = pnand %p136, %p137
      %p139 = pneg %p138
      // Predicated region
      $region9: #{tpu_custom_call.1} parent=5 // pred_check
        _
      $region10: #{tpu_custom_call.1} parent=5 // pred_check_branch
        %141 = sbr.rel (%p138) target = $region12
      $region11: #{tpu_custom_call.1} parent=5 // pred_region
        %s142 = ssub.s32 %s12, 1
      $region12: #{tpu_custom_call.1} parent=5 // pred_fallthru
        _
      %p143 = scmp.lt.s32.totalorder %s12, 4
      // Predicated region
      $region13: #{tpu_custom_call.1} parent=5 // pred_check
        %p144 = pneg %p143
      $region14: #{tpu_custom_call.1} parent=5 // pred_check_branch
        %146 = sbr.rel (%p144) target = $region16
      $region15: #{tpu_custom_call.1} parent=5 // pred_region
        // Predicated region
        $region17: #{tpu_custom_call.1} parent=15 // pred_check
          %p147 = pneg %p44
        $region18: #{tpu_custom_call.1} parent=15 // pred_check_branch
          %149 = sbr.rel (%p147) target = $region20
        $region19: #{tpu_custom_call.1} parent=15 // pred_region
          %p150 = scmp.lt.s32.totalorder %s19, 1
          %s151 = scalar_select %p150, %s19, 1
          %s152 = smul.addr %s151, 8
          %s153 = scalar_lea.vmem %s0, %s152
        $region20: #{tpu_custom_call.1} parent=15 // pred_fallthru
          _
        // Predicated region
        $region21: #{tpu_custom_call.1} parent=15 // pred_check
          %p154 = pneg %p70
        $region22: #{tpu_custom_call.1} parent=15 // pred_check_branch
          %156 = sbr.rel (%p154) target = $region24
        $region23: #{tpu_custom_call.1} parent=15 // pred_region
          %s157 = sand.u32 %s60, 1
          %s158 = sand.u32 %s60, 1
          %s159 = smul.addr %s158, 64
          %s160 = scalar_lea.vmem [#allocation3], %s159
          %s161 = smul.u32 2, %s20
          %s162 = smul.addr %s161, 8
          %s163 = scalar_lea.vmem %s1, %s162
          // Predicated region
          $region25: #{tpu_custom_call.1} parent=23 // pred_check
            _
          $region26: #{tpu_custom_call.1} parent=23 // pred_check_branch
            %165 = sbr.rel (0) target = $region28
          $region27: #{tpu_custom_call.1} parent=23 // pred_region
            // Predicated region
            $region29: #{tpu_custom_call.1} parent=27 // pred_check
              _
            $region30: #{tpu_custom_call.1} parent=27 // pred_check_branch
              %167 = sbr.rel (0) target = $region32
            $region31: #{tpu_custom_call.1} parent=27 // pred_region
              loop: start=0, step=1, limit=1
              $region33: #{tpu_custom_call.1} parent=31 // loop_pre_header
                _
              $region34: #{tpu_custom_call.1} parent=31 // loop_header
                %s169 = sphi 0, %s173
                %p170 = scmp.ge.s32.totalorder %s169, 1
                %s174 = sphi %s163, %s163
                %s175 = sphi %s160, %s160
              $region35: #{tpu_custom_call.1} parent=31 // loop_header_branch
                %172 = sbr.rel (%p170) target = $region39
              $region36: #{tpu_custom_call.1} parent=31 // loop_body
                %v176 = vld [vmem:[%s174] sm:$0xff]
                %177 = vst [vmem:[%s175] sm:$0xff] %v176
                %v178 = vld [vmem:[%s174 + $0x8] sm:$0xff]
                %179 = vst [vmem:[%s175 + $0x8] sm:$0xff] %v178
                %v180 = vld [vmem:[%s174 + $0x20] sm:$0xff]
                %181 = vst [vmem:[%s175 + $0x10] sm:$0xff] %v180
                %v182 = vld [vmem:[%s174 + $0x28] sm:$0xff]
                %183 = vst [vmem:[%s175 + $0x18] sm:$0xff] %v182
                %v184 = vld [vmem:[%s174 + $0x40] sm:$0xff]
                %185 = vst [vmem:[%s175 + $0x20] sm:$0xff] %v184
                %v186 = vld [vmem:[%s174 + $0x48] sm:$0xff]
                %187 = vst [vmem:[%s175 + $0x28] sm:$0xff] %v186
                %v188 = vld [vmem:[%s174 + $0x60] sm:$0xff]
                %189 = vst [vmem:[%s175 + $0x30] sm:$0xff] %v188
                %v190 = vld [vmem:[%s174 + $0x68] sm:$0xff]
                %191 = vst [vmem:[%s175 + $0x38] sm:$0xff] %v190
              $region37: #{tpu_custom_call.1} parent=31 // loop_footer
                %s173 = sadd.s32 1, %s169
              $region38: #{tpu_custom_call.1} parent=31 // loop_footer_branch
                %168 = sbr.rel target = $region34
              $region39: #{tpu_custom_call.1} parent=31 // loop_exit
                _
            $region32: #{tpu_custom_call.1} parent=27 // pred_fallthru
              _
            // Predicated region
            $region40: #{tpu_custom_call.1} parent=27 // pred_check
              _
            $region41: #{tpu_custom_call.1} parent=27 // pred_check_branch
              %193 = sbr.rel target = $region43
            $region42: #{tpu_custom_call.1} parent=27 // pred_region
              _
            $region43: #{tpu_custom_call.1} parent=27 // pred_fallthru
              _
          $region28: #{tpu_custom_call.1} parent=23 // pred_fallthru
            _
          %194 = vnop
        $region24: #{tpu_custom_call.1} parent=15 // pred_fallthru
          _
        // Predicated region
        $region44: #{tpu_custom_call.1} parent=15 // pred_check
          %p195 = pneg %p96
        $region45: #{tpu_custom_call.1} parent=15 // pred_check_branch
          %197 = sbr.rel (%p195) target = $region47
        $region46: #{tpu_custom_call.1} parent=15 // pred_region
          %s198 = smul.u32 16, %s20
          %p199 = scmp.lt.s32.totalorder %s198, 31
          %s200 = scalar_select %p199, %s198, 31
          %s201 = smul.addr %s200, 8
          %s202 = scalar_lea.vmem %s2, %s201
          %s203 = smul.u32 16, %s20
        $region47: #{tpu_custom_call.1} parent=15 // pred_fallthru
          _
      $region16: #{tpu_custom_call.1} parent=5 // pred_fallthru
        _
      %p204 = scmp.le.s32.totalorder 1, %s12
      %p205 = scmp.lt.s32.totalorder %s12, 5
      %p206 = pnand %p204, %p205
      %p207 = pneg %p206
      // Predicated region
      $region48: #{tpu_custom_call.1} parent=5 // pred_check
        _
      $region49: #{tpu_custom_call.1} parent=5 // pred_check_branch
        %209 = sbr.rel (%p206) target = $region51
      $region50: #{tpu_custom_call.1} parent=5 // pred_region
        %s210 = ssub.s32 %s12, 1
        %s211 = sand.u32 %s63, 1
        %s212 = sand.u32 %s63, 1
        %s213 = smul.addr %s212, 64
        %s214 = scalar_lea.vmem [#allocation3], %s213
        // Predicated region
        $region52: #{tpu_custom_call.1} parent=50 // pred_check
          %p215 = pneg %p76
        $region53: #{tpu_custom_call.1} parent=50 // pred_check_branch
          %217 = sbr.rel (%p215) target = $region55
        $region54: #{tpu_custom_call.1} parent=50 // pred_region
          _
        $region55: #{tpu_custom_call.1} parent=50 // pred_fallthru
          _
        %p218 = scmp.lt.s32.totalorder %s21, 1
        %s219 = scalar_select %p218, %s21, 1
        %s220 = smul.addr %s219, 8
        %s221 = scalar_lea.vmem %s0, %s220
        %p222 = pneg %p50
        %p223 = pneg %p47
        %s224 = sand.u32 %s63, 1
        %s225 = sand.u32 %s63, 1
        %s226 = smul.addr %s225, 64
        %s227 = scalar_lea.vmem [#allocation3], %s226
        %p228 = pneg %p76
        %p229 = pneg %p73
        %s230 = smul.u32 16, %s22
        %p231 = scmp.lt.s32.totalorder %s230, 31
        %s232 = scalar_select %p231, %s230, 31
        %s233 = smul.addr %s232, 8
        %s234 = scalar_lea.vmem %s2, %s233
        %p235 = pneg %p102
        %p236 = pneg %p99
        %p237 = pneg %p128
        %p238 = pneg %p125
        %s239 = sand.u32 %s115, 1
        %s240 = scalar_lea.sflag [#allocation5], %s239
        %s241 = sand.u32 %s115, 1
        %s242 = smul.addr %s241, 8
        %s243 = scalar_lea.vmem [#allocation4], %s242
        %p244 = scmp.lt.s32.totalorder %s21, 1
        %s245 = scalar_select %p244, %s21, 1
        %s246 = smul.addr %s245, 8
        %s247 = scalar_lea.vmem %s0, %s246
        %s248 = smul.u32 2, %s22
        %s249 = smul.u32 16, %s22
        %p250 = scmp.lt.s32.totalorder %s249, 31
        %s251 = scalar_select %p250, %s249, 31
        %s252 = smul.addr %s251, 8
        %s253 = scalar_lea.vmem %s2, %s252
        %s254 = smul.u32 16, %s22
        %p255 = scmp.eq.s32.totalorder %s22, 0
        // Predicated region
        $region56: #{tpu_custom_call.1} parent=50 // pred_check
          %p256 = pneg %p255
        $region57: #{tpu_custom_call.1} parent=50 // pred_check_branch
          %258 = sbr.rel (%p256) target = $region59
        $region58: #{tpu_custom_call.1} parent=50 // pred_region
          %vm259 = vcmask 261120
          %260 = vst.msk [vmem:[#allocation2] sm:$0xff] %vm259, 0.0
        $region59: #{tpu_custom_call.1} parent=50 // pred_fallthru
          _
        %v261 = vld [vmem:[%s247] sm:$0xff]
        %v262 = vld [vmem:[%s214] sm:$0xff]
        %v263 = vld [vmem:[%s214 + $0x8] sm:$0xff]
        %v264 = vld [vmem:[%s214 + $0x10] sm:$0xff]
        %v265 = vld [vmem:[%s214 + $0x18] sm:$0xff]
        %v266 = vld [vmem:[%s214 + $0x20] sm:$0xff]
        %v267 = vld [vmem:[%s214 + $0x28] sm:$0xff]
        %v268 = vld [vmem:[%s214 + $0x30] sm:$0xff]
        %v269 = vld [vmem:[%s214 + $0x38] sm:$0xff]
        %vm270 = vcmask 261120
        %v272 = vsel %vm270, %v261, 0
        %274 = vmatprep.subr.mxu0 %v263
        %275 = vmatpush1.msra.mxu0 %v262
        %276 = vmatprep.subr.mxu0 %v265
        %277 = vmatpush1.msra.mxu0 %v264
        %278 = vmatprep.subr.mxu0 %v267
        %279 = vmatpush1.msra.mxu0 %v266
        %280 = vmatprep.subr.mxu0 %v269
        %281 = vmatpush1.msra.mxu0 %v268
        %282 = vmatprep.subr.mxu0 0.0
        %283 = vmatpush1.msra.mxu0 0.0
        %284 = vmatprep.subr.mxu0 0.0
        %285 = vmatpush1.msra.mxu0 0.0
        %286 = vmatprep.subr.mxu0 0.0
        %287 = vmatpush1.msra.mxu0 0.0
        %288 = vmatprep.subr.mxu0 0.0
        %289 = vmatpush1.msra.mxu0 0.0
        %290 = vmatprep.subr.mxu0 0.0
        %291 = vmatpush1.msra.mxu0 0.0
        %292 = vmatprep.subr.mxu0 0.0
        %293 = vmatpush1.msra.mxu0 0.0
        %294 = vmatprep.subr.mxu0 0.0
        %295 = vmatpush1.msra.mxu0 0.0
        %296 = vmatprep.subr.mxu0 0.0
        %297 = vmatpush1.msra.mxu0 0.0
        %298 = vmatprep.subr.mxu0 0.0
        %299 = vmatpush1.msra.mxu0 0.0
        %300 = vmatprep.subr.mxu0 0.0
        %301 = vmatpush1.msra.mxu0 0.0
        %302 = vmatprep.subr.mxu0 0.0
        %303 = vmatpush1.msra.mxu0 0.0
        %304 = vmatprep.subr.mxu0 0.0
        %305 = vmatpush1.msra.mxu0 0.0
        %306 = vmatprep.subr.mxu0 0.0
        %307 = vmatpush1.msra.mxu0 0.0
        %308 = vmatprep.subr.mxu0 0.0
        %309 = vmatpush1.msra.mxu0 0.0
        %310 = vmatprep.subr.mxu0 0.0
        %311 = vmatpush1.msra.mxu0 0.0
        %312 = vmatprep.subr.mxu0 0.0
        %313 = vmatpush1.msra.mxu0 0.0
        %314 = vmatprep.subr.mxu0 0.0
        %315 = vmatpush1.msra.mxu0 0.0
        %316 = vmatprep.subr.mxu0 0.0
        %317 = vmatpush1.msra.mxu0 0.0
        %318 = vmatprep.subr.mxu0 0.0
        %319 = vmatpush1.msra.mxu0 0.0
        %320 = vmatprep.subr.mxu0 0.0
        %321 = vmatpush1.msra.mxu0 0.0
        %322 = vmatprep.subr.mxu0 0.0
        %323 = vmatpush1.msra.mxu0 0.0
        %324 = vmatprep.subr.mxu0 0.0
        %325 = vmatpush1.msra.mxu0 0.0
        %326 = vmatprep.subr.mxu0 0.0
        %327 = vmatpush1.msra.mxu0 0.0
        %328 = vmatprep.subr.mxu0 0.0
        %329 = vmatpush1.msra.mxu0 0.0
        %330 = vmatprep.subr.mxu0 0.0
        %331 = vmatpush1.msra.mxu0 0.0
        %332 = vmatprep.subr.mxu0 0.0
        %333 = vmatpush1.msra.mxu0 0.0
        %334 = vmatprep.subr.mxu0 0.0
        %335 = vmatpush1.msra.mxu0 0.0
        %336 = vmatprep.subr.mxu0 0.0
        %337 = vmatpush1.msra.mxu0 0.0
        %338 = vmatprep.mubr.f32.mxu0 0.0
        %339 = vmatmul.mubr.f32.gmra.mrb[0].mxu0 %v272
        %v340 = vpop.f32.mrb[0].mxu0
        %v341 = vadd.f32 0.0, %v340
        %v342 = vpop.f32.mrb[0].mxu0
        %v343 = vadd.f32 0.0, %v342
        %344 = vdwg.mxu0
        %v345 = vxor.u32 %v341, 2147483648
        %v346 = vmul.f32 %v345, 1.442695
        %v347 = vpow.pop %v346
        %v348 = vadd.f32 %v347, 1.0
        %v349 = vrcp.pop %v348
        %v350 = vmul.f32 1.0, %v349
        %v351 = vmul.f32 %v341, %v350
        %v352 = vmul.f32 %v351, %v343
        %v353 = vld [vmem:[#allocation2] sm:$0xff]
        %v354 = vld [vmem:[%s253] sm:$0xff]
        %v355 = vld [vmem:[%s253 + $0x8] sm:$0xff]
        %v356 = vld [vmem:[%s253 + $0x10] sm:$0xff]
        %v357 = vld [vmem:[%s253 + $0x18] sm:$0xff]
        %v358 = vld [vmem:[%s253 + $0x20] sm:$0xff]
        %v359 = vld [vmem:[%s253 + $0x28] sm:$0xff]
        %v360 = vld [vmem:[%s253 + $0x30] sm:$0xff]
        %v361 = vld [vmem:[%s253 + $0x38] sm:$0xff]
        %v362 = vld [vmem:[%s253 + $0x40] sm:$0xff]
        %v363 = vld [vmem:[%s253 + $0x48] sm:$0xff]
        %v364 = vld [vmem:[%s253 + $0x50] sm:$0xff]
        %v365 = vld [vmem:[%s253 + $0x58] sm:$0xff]
        %v366 = vld [vmem:[%s253 + $0x60] sm:$0xff]
        %v367 = vld [vmem:[%s253 + $0x68] sm:$0xff]
        %v368 = vld [vmem:[%s253 + $0x70] sm:$0xff]
        %v369 = vld [vmem:[%s253 + $0x78] sm:$0xff]
        %370 = vmatprep.subr.mxu0 0.0
        %371 = vmatpush1.msra.mxu0 %v354
        %372 = vmatprep.subr.mxu0 0.0
        %373 = vmatpush1.msra.mxu0 %v355
        %374 = vmatprep.subr.mxu0 0.0
        %375 = vmatpush1.msra.mxu0 %v356
        %376 = vmatprep.subr.mxu0 0.0
        %377 = vmatpush1.msra.mxu0 %v357
        %378 = vmatprep.subr.mxu0 0.0
        %379 = vmatpush1.msra.mxu0 %v358
        %380 = vmatprep.subr.mxu0 0.0
        %381 = vmatpush1.msra.mxu0 %v359
        %382 = vmatprep.subr.mxu0 0.0
        %383 = vmatpush1.msra.mxu0 %v360
        %384 = vmatprep.subr.mxu0 0.0
        %385 = vmatpush1.msra.mxu0 %v361
        %386 = vmatprep.subr.mxu0 0.0
        %387 = vmatpush1.msra.mxu0 %v362
        %388 = vmatprep.subr.mxu0 0.0
        %389 = vmatpush1.msra.mxu0 %v363
        %390 = vmatprep.subr.mxu0 0.0
        %391 = vmatpush1.msra.mxu0 %v364
        %392 = vmatprep.subr.mxu0 0.0
        %393 = vmatpush1.msra.mxu0 %v365
        %394 = vmatprep.subr.mxu0 0.0
        %395 = vmatpush1.msra.mxu0 %v366
        %396 = vmatprep.subr.mxu0 0.0
        %397 = vmatpush1.msra.mxu0 %v367
        %398 = vmatprep.subr.mxu0 0.0
        %399 = vmatpush1.msra.mxu0 %v368
        %400 = vmatprep.subr.mxu0 0.0
        %401 = vmatpush1.msra.mxu0 %v369
        %402 = vmatprep.subr.mxu0 0.0
        %403 = vmatpush1.msra.mxu0 0.0
        %404 = vmatprep.subr.mxu0 0.0
        %405 = vmatpush1.msra.mxu0 0.0
        %406 = vmatprep.subr.mxu0 0.0
        %407 = vmatpush1.msra.mxu0 0.0
        %408 = vmatprep.subr.mxu0 0.0
        %409 = vmatpush1.msra.mxu0 0.0
        %410 = vmatprep.subr.mxu0 0.0
        %411 = vmatpush1.msra.mxu0 0.0
        %412 = vmatprep.subr.mxu0 0.0
        %413 = vmatpush1.msra.mxu0 0.0
        %414 = vmatprep.subr.mxu0 0.0
        %415 = vmatpush1.msra.mxu0 0.0
        %416 = vmatprep.subr.mxu0 0.0
        %417 = vmatpush1.msra.mxu0 0.0
        %418 = vmatprep.subr.mxu0 0.0
        %419 = vmatpush1.msra.mxu0 0.0
        %420 = vmatprep.subr.mxu0 0.0
        %421 = vmatpush1.msra.mxu0 0.0
        %422 = vmatprep.subr.mxu0 0.0
        %423 = vmatpush1.msra.mxu0 0.0
        %424 = vmatprep.subr.mxu0 0.0
        %425 = vmatpush1.msra.mxu0 0.0
        %426 = vmatprep.subr.mxu0 0.0
        %427 = vmatpush1.msra.mxu0 0.0
        %428 = vmatprep.subr.mxu0 0.0
        %429 = vmatpush1.msra.mxu0 0.0
        %430 = vmatprep.subr.mxu0 0.0
        %431 = vmatpush1.msra.mxu0 0.0
        %432 = vmatprep.subr.mxu0 0.0
        %433 = vmatpush1.msra.mxu0 0.0
        %434 = vmatprep.mubr.f32.mxu0 0.0
        %435 = vmatmul.mubr.f32.gmra.mrb[0].mxu0 %v352
        %v436 = vpop.f32.mrb[0].mxu0
        %v437 = vadd.f32 0.0, %v436
        %v438 = vpop.f32.mrb[0].mxu0
        %439 = vdwg.mxu0
        %v440 = vadd.f32 %v353, %v437
        %441 = vst.msk [vmem:[#allocation2] sm:$0xff] %vm270, %v440
        %p442 = scmp.eq.s32.totalorder %s22, 1
        // Predicated region
        $region60: #{tpu_custom_call.1} parent=50 // pred_check
          %p443 = pneg %p442
        $region61: #{tpu_custom_call.1} parent=50 // pred_check_branch
          %445 = sbr.rel (%p443) target = $region63
        $region62: #{tpu_custom_call.1} parent=50 // pred_region
          %v446 = vld [vmem:[#allocation2] sm:$0xff]
          %447 = vst.msk [vmem:[%s243] sm:$0xff] %vm270, %v446
        $region63: #{tpu_custom_call.1} parent=50 // pred_fallthru
          _
        %s448 = sand.u32 %s115, 1
        %s449 = scalar_lea.sflag [#allocation5], %s448
        %s450 = sand.u32 %s115, 1
        %s451 = smul.addr %s450, 8
        %s452 = scalar_lea.vmem [#allocation4], %s451
        // Predicated region
        $region64: #{tpu_custom_call.1} parent=50 // pred_check
          %p453 = pneg %p125
        $region65: #{tpu_custom_call.1} parent=50 // pred_check_branch
          %455 = sbr.rel (%p453) target = $region67
        $region66: #{tpu_custom_call.1} parent=50 // pred_region
          %s457 = ssub.s32 128, 128
          %458 = vsyncadd %s449, %s457
          %s459 = smul.addr %s21, 128
          %s460 = scalar_lea.hbm %s3, %s459
          %s462 = sshll.u32 %s452, 4
          %s463 = int_to_ptr.vmem [resolvable:$true] %s462
          %465 = dma.vmem_to_hbm [thread:$0]  %s463, 128, %s460, %s449
        $region67: #{tpu_custom_call.1} parent=50 // pred_fallthru
          _
      $region51: #{tpu_custom_call.1} parent=5 // pred_fallthru
        _
      %p466 = scmp.le.s32.totalorder 2, %s12
      // Predicated region
      $region68: #{tpu_custom_call.1} parent=5 // pred_check
        %p467 = pneg %p466
      $region69: #{tpu_custom_call.1} parent=5 // pred_check_branch
        %469 = sbr.rel (%p467) target = $region71
      $region70: #{tpu_custom_call.1} parent=5 // pred_region
        %s470 = ssub.s32 %s12, 2
        // Predicated region
        $region72: #{tpu_custom_call.1} parent=70 // pred_check
          %p471 = pneg %p131
        $region73: #{tpu_custom_call.1} parent=70 // pred_check_branch
          %473 = sbr.rel (%p471) target = $region75
        $region74: #{tpu_custom_call.1} parent=70 // pred_region
          %s474 = sand.u32 %s116, 1
          %s475 = scalar_lea.sflag [#allocation5], %s474
          %s476 = sand.u32 %s116, 1
          %s477 = smul.addr %s476, 8
          %s478 = scalar_lea.vmem [#allocation4], %s477
          %479 = dma.done %s475, 128
        $region75: #{tpu_custom_call.1} parent=70 // pred_fallthru
          _
      $region71: #{tpu_custom_call.1} parent=5 // pred_fallthru
        _
    $region6: #{tpu_custom_call.1} parent=1 // loop_footer
      %s16 = sadd.s32 1, %s12
    $region7: #{tpu_custom_call.1} parent=1 // loop_footer_branch
      %11 = sbr.rel target = $region3
    $region8: #{tpu_custom_call.1} parent=1 // loop_exit
      _
    %480 = vsyncpa [#allocation5], 1
    %s481 = scalar_lea.sflag [#allocation5], 1
    %482 = vsyncpa %s481, 1

</llo_original>
